<compile_context>
chip_gen: v5e
topology: v5e:2x2
jax: 0.10.0
libtpu: 0.0.40
codegen_flags: <defaults>
</compile_context>

<pallas_src>
import functools

import jax
import jax.numpy as jnp
from jax.experimental import pallas as pl
from jax.experimental.pallas import tpu as pltpu

BN_EPS = 1e-5
LANE = 128
SUBLANE = 8


def _round_up(x, m):
    return (x + m - 1) // m * m


# --------------------------------------------------------------------------- #
# Kernel: one batch tile through the whole (BN-folded) MLP.
# Weights/biases are VMEM-resident across all grid steps (constant index_map).
# --------------------------------------------------------------------------- #
def _mlp_kernel(x_ref, w1_ref, b1_ref, w2_ref, b2_ref, w3_ref, b3_ref, out_ref):
    # Cast the streamed x tile to the matmul compute dtype in-kernel (the VPU
    # cast hides under DMA/MXU; avoids a materialized wrapper-side copy of x).
    x = x_ref[...].astype(w1_ref.dtype)

    # fc1 (BN scale folded into w1 rows, shift folded into b1) + relu (f32 VPU)
    h1 = jnp.dot(x, w1_ref[...], preferred_element_type=jnp.float32) + b1_ref[...]
    h1 = jnp.maximum(h1, 0.0).astype(w2_ref.dtype)

    # fc2 + relu
    h2 = jnp.dot(h1, w2_ref[...], preferred_element_type=jnp.float32) + b2_ref[...]
    h2 = jnp.maximum(h2, 0.0).astype(w3_ref.dtype)

    # fc3 (identity out_fn).  Output last dim is the true out_dim (unpadded):
    # a narrow masked store beats a 16x-inflated padded writeback + post-slice.
    out = jnp.dot(h2, w3_ref[...], preferred_element_type=jnp.float32) + b3_ref[...]
    out_ref[...] = out.astype(out_ref.dtype)


# --------------------------------------------------------------------------- #
# Wrapper: BN stats + folding + lane-dense hidden padding + batch-gridded call.
# --------------------------------------------------------------------------- #
@functools.partial(jax.jit, static_argnames=("compute_dtype", "tile_b"))
def mlp_forward(x, params, *, compute_dtype=jnp.bfloat16, tile_b=4096):
    """x: (B, input_dim); params: dict of BN + fc weights (fc weights as (in, out))."""
    f32 = jnp.float32
    B, in_dim = x.shape
    hid = params["w1"].shape[1]
    out_dim = params["w3"].shape[1]

    # ---- BatchNorm1d (training mode): full-batch stats, stable two-pass form.
    # The only cross-row reduction lives here, so the kernel grid stays parallel.
    x32 = x.astype(f32)
    mean = jnp.mean(x32, axis=0, keepdims=True)                    # (1, in)
    var = jnp.mean((x32 - mean) ** 2, axis=0, keepdims=True)       # biased, as PyTorch
    scale = params["bn_w"].astype(f32) * jax.lax.rsqrt(var + BN_EPS)
    shift = params["bn_b"].astype(f32) - mean * scale

    # ---- Fold BN affine into fc1 (tiny XLA ops on the weights only).
    w1 = params["w1"].astype(f32)
    w1_eff = w1 * scale.reshape(-1, 1)                             # scale each input-feature row
    b1_eff = params["b1"].astype(f32) + shift @ w1                 # (1, hid)

    # ---- Pad hidden dim to 128 lanes (lane-dense intermediates).  in_dim and
    # out_dim stay unpadded (see header).  Weights cast once to compute dtype;
    # biases stay f32 (bias-add / ReLU run in f32 on the VPU).
    HID_PAD = _round_up(hid, LANE)

    def pad2(a, rows, cols):
        return jnp.pad(a, ((0, rows - a.shape[0]), (0, cols - a.shape[1])))

    w1_p = pad2(w1_eff, in_dim, HID_PAD).astype(compute_dtype)
    b1_p = pad2(b1_eff, 1, HID_PAD)
    w2_p = pad2(params["w2"].astype(f32), HID_PAD, HID_PAD).astype(compute_dtype)
    b2_p = pad2(params["b2"].astype(f32), 1, HID_PAD)
    w3_p = pad2(params["w3"].astype(f32), HID_PAD, out_dim).astype(compute_dtype)
    b3_p = params["b3"].astype(f32)                                # (1, out_dim)

    # ---- Batch tiling: large tiles amortize the ~0.35us/step overhead; x/out
    # streamed, weights resident.  Ragged last tile handled by the cdiv grid
    # (no wrapper-side pad copy of x).
    TILE_B = min(tile_b, _round_up(B, SUBLANE))
    if B >= 2 * SUBLANE and pl.cdiv(B, TILE_B) < 2:
        # v7x megacore: keep >= 2 grid steps so both TensorCores get work.
        TILE_B = _round_up(pl.cdiv(B, 2), SUBLANE)
    grid = (pl.cdiv(B, TILE_B),)

    def resident(shape):
        # Grid-invariant weight/bias blocks stay VMEM-resident.
        # (For large hidden_dim: add pipeline_mode=pl.Buffered(1) here and
        #  re-derive vmem_limit_bytes for v7x's 64 MiB VMEM.)
        return pl.BlockSpec(shape, lambda i: (0, 0))

    out = pl.pallas_call(
        _mlp_kernel,
        out_shape=jax.ShapeDtypeStruct((B, out_dim), f32),
        grid=grid,
        in_specs=[
            pl.BlockSpec((TILE_B, in_dim), lambda i: (i, 0)),      # streamed x tile
            resident((in_dim, HID_PAD)),                           # w1 (BN-folded)
            resident((1, HID_PAD)),                                # b1 (BN-folded, f32)
            resident((HID_PAD, HID_PAD)),                          # w2
            resident((1, HID_PAD)),                                # b2 (f32)
            resident((HID_PAD, out_dim)),                          # w3
            resident((1, out_dim)),                                # b3 (f32)
        ],
        out_specs=pl.BlockSpec((TILE_B, out_dim), lambda i: (i, 0)),
        compiler_params=pltpu.CompilerParams(
            dimension_semantics=("parallel",),      # BN stats precomputed -> fully parallel over B
            vmem_limit_bytes=32 * 1024 * 1024,
        ),
    )(x, w1_p, b1_p, w2_p, b2_p, w3_p, b3_p)

    return out                                                    # (B, out_dim), no post-slice


# --------------------------------------------------------------------------- #
# Parameter init (matches PyTorch defaults) and pure-JAX reference.
# --------------------------------------------------------------------------- #
def init_params(key, input_dim, hidden_dim, out_dim):
    """Linear: U(-1/sqrt(fan_in), 1/sqrt(fan_in)); BatchNorm1d: weight=1, bias=0."""
    ks = jax.random.split(key, 6)

    def linear(kw, kb, fan_in, fan_out):
        bound = 1.0 / jnp.sqrt(jnp.float32(fan_in))
        w = jax.random.uniform(kw, (fan_in, fan_out), jnp.float32, -bound, bound)
        b = jax.random.uniform(kb, (1, fan_out), jnp.float32, -bound, bound)
        return w, b

    w1, b1 = linear(ks[0], ks[1], input_dim, hidden_dim)
    w2, b2 = linear(ks[2], ks[3], hidden_dim, hidden_dim)
    w3, b3 = linear(ks[4], ks[5], hidden_dim, out_dim)
    return {
        "bn_w": jnp.ones((1, input_dim), jnp.float32),
        "bn_b": jnp.zeros((1, input_dim), jnp.float32),
        "w1": w1, "b1": b1, "w2": w2, "b2": b2, "w3": w3, "b3": b3,
    }


def reference_forward(x, p):
    mean = jnp.mean(x, axis=0, keepdims=True)
    var = jnp.mean((x - mean) ** 2, axis=0, keepdims=True)
    xin = (x - mean) / jnp.sqrt(var + BN_EPS) * p["bn_w"] + p["bn_b"]
    h1 = jnp.maximum(xin @ p["w1"] + p["b1"], 0.0)
    h2 = jnp.maximum(h1 @ p["w2"] + p["b2"], 0.0)
    return h2 @ p["w3"] + p["b3"]


if __name__ == "__main__":
    INPUT_DIM, HIDDEN_DIM, OUT_DIM = 16, 64, 8

    key = jax.random.PRNGKey(0)
    k_x1, k_x2, k_x3, k_p = jax.random.split(key, 4)
    params = init_params(k_p, INPUT_DIM, HIDDEN_DIM, OUT_DIM)

    # 1) Small single-tile batch, f32 compute: exact-path check.
    x1 = jax.random.normal(k_x1, (8, INPUT_DIM), jnp.float32)
    out1 = mlp_forward(x1, params, compute_dtype=jnp.float32)
    jax.block_until_ready(out1)
    ref1 = reference_forward(x1, params)
    assert out1.shape == (8, OUT_DIM)
    assert jnp.allclose(out1, ref1, atol=1e-4, rtol=1e-4), "f32 small-batch mismatch"

    # 2) Ragged 2-step grid (B=650 -> TILE_B=328, partial last tile), f32.
    #    Exercises the cdiv-grid masking path flagged in the review.
    x2 = jax.random.normal(k_x2, (650, INPUT_DIM), jnp.float32)
    out2 = mlp_forward(x2, params, compute_dtype=jnp.float32)
    jax.block_until_ready(out2)
    ref2 = reference_forward(x2, params)
    assert out2.shape == (650, OUT_DIM)
    assert jnp.allclose(out2, ref2, atol=1e-4, rtol=1e-4), "f32 ragged-grid mismatch"

    # 3) Default-tile path (B=5000 -> TILE_B=4096, grid=2, ragged last tile):
    #    f32 tight check + default bf16 compute loose check.
    x3 = jax.random.normal(k_x3, (5000, INPUT_DIM), jnp.float32)
    out3 = mlp_forward(x3, params, compute_dtype=jnp.float32)
    jax.block_until_ready(out3)
    ref3 = reference_forward(x3, params)
    assert out3.shape == (5000, OUT_DIM)
    assert jnp.allclose(out3, ref3, atol=1e-4, rtol=1e-4), "f32 large-batch mismatch"

    out3_bf16 = mlp_forward(x3, params)     # default compute_dtype = bf16
    jax.block_until_ready(out3_bf16)
    assert out3_bf16.shape == (5000, OUT_DIM)
    assert float(jnp.max(jnp.abs(out3_bf16 - ref3))) < 0.1, "bf16 path diverged"

    print("KERNEL_OK")
</pallas_src>

<mosaic_0001>
module attributes {stable_mosaic.version = 11 : i64} {
  func.func @_mlp_kernel(%arg0: i32, %arg1: memref<8x16xf32, #tpu.memory_space<vmem>>, %arg2: memref<16x128xf32, #tpu.memory_space<vmem>>, %arg3: memref<1x128xf32, #tpu.memory_space<vmem>>, %arg4: memref<128x128xf32, #tpu.memory_space<vmem>>, %arg5: memref<1x128xf32, #tpu.memory_space<vmem>>, %arg6: memref<128x8xf32, #tpu.memory_space<vmem>>, %arg7: memref<1x8xf32, #tpu.memory_space<vmem>>, %arg8: memref<8x8xf32, #tpu.memory_space<vmem>>) attributes {dimension_semantics = [#tpu.dimension_semantics<parallel>], iteration_bounds = array<i64: 1>, scalar_prefetch = 0 : i64, scratch_operands = 0 : i64, tpu.core_type = #tpu.core_type<tc>, window_params = [{transform_indices = @transform_0, window_bounds = array<i64: 8, 16>}, {pipeline_mode = #tpu.pipeline_mode<synchronous>, transform_indices = @transform_1, window_bounds = array<i64: 16, 128>}, {pipeline_mode = #tpu.pipeline_mode<synchronous>, transform_indices = @transform_2, window_bounds = array<i64: 1, 128>}, {pipeline_mode = #tpu.pipeline_mode<synchronous>, transform_indices = @transform_3, window_bounds = array<i64: 128, 128>}, {pipeline_mode = #tpu.pipeline_mode<synchronous>, transform_indices = @transform_4, window_bounds = array<i64: 1, 128>}, {pipeline_mode = #tpu.pipeline_mode<synchronous>, transform_indices = @transform_5, window_bounds = array<i64: 128, 8>}, {pipeline_mode = #tpu.pipeline_mode<synchronous>, transform_indices = @transform_6, window_bounds = array<i64: 1, 8>}, {transform_indices = @transform_7, window_bounds = array<i64: 8, 8>}]} {
    %c0 = arith.constant 0 : index
    %c0_0 = arith.constant 0 : index
    %0 = vector.load %arg1[%c0, %c0_0] : memref<8x16xf32, #tpu.memory_space<vmem>>, vector<8x16xf32>
    %c0_1 = arith.constant 0 : index
    %c0_2 = arith.constant 0 : index
    %1 = vector.load %arg2[%c0_1, %c0_2] : memref<16x128xf32, #tpu.memory_space<vmem>>, vector<16x128xf32>
    %cst = arith.constant dense<0.000000e+00> : vector<8x128xf32>
    %2 = tpu.matmul %0, %1, %cst {dimension_numbers = #tpu.dot_dimension_numbers<[1], [0], [0], [1], [0, 0, 1, 1], [], []>} : vector<8x16xf32>, vector<16x128xf32>, vector<8x128xf32> -> vector<8x128xf32>
    %c0_3 = arith.constant 0 : index
    %c0_4 = arith.constant 0 : index
    %3 = vector.load %arg3[%c0_3, %c0_4] : memref<1x128xf32, #tpu.memory_space<vmem>>, vector<1x128xf32>
    %4 = vector.broadcast %3 : vector<1x128xf32> to vector<8x128xf32>
    %5 = arith.addf %2, %4 : vector<8x128xf32>
    %cst_5 = arith.constant 0.000000e+00 : f32
    %6 = vector.broadcast %cst_5 : f32 to vector<8x128xf32>
    %7 = arith.maximumf %5, %6 : vector<8x128xf32>
    %c0_6 = arith.constant 0 : index
    %c0_7 = arith.constant 0 : index
    %8 = vector.load %arg4[%c0_6, %c0_7] : memref<128x128xf32, #tpu.memory_space<vmem>>, vector<128x128xf32>
    %cst_8 = arith.constant dense<0.000000e+00> : vector<8x128xf32>
    %9 = tpu.matmul %7, %8, %cst_8 {dimension_numbers = #tpu.dot_dimension_numbers<[1], [0], [0], [1], [0, 0, 1, 1], [], []>} : vector<8x128xf32>, vector<128x128xf32>, vector<8x128xf32> -> vector<8x128xf32>
    %c0_9 = arith.constant 0 : index
    %c0_10 = arith.constant 0 : index
    %10 = vector.load %arg5[%c0_9, %c0_10] : memref<1x128xf32, #tpu.memory_space<vmem>>, vector<1x128xf32>
    %11 = vector.broadcast %10 : vector<1x128xf32> to vector<8x128xf32>
    %12 = arith.addf %9, %11 : vector<8x128xf32>
    %cst_11 = arith.constant 0.000000e+00 : f32
    %13 = vector.broadcast %cst_11 : f32 to vector<8x128xf32>
    %14 = arith.maximumf %12, %13 : vector<8x128xf32>
    %c0_12 = arith.constant 0 : index
    %c0_13 = arith.constant 0 : index
    %15 = vector.load %arg6[%c0_12, %c0_13] : memref<128x8xf32, #tpu.memory_space<vmem>>, vector<128x8xf32>
    %cst_14 = arith.constant dense<0.000000e+00> : vector<8x8xf32>
    %16 = tpu.matmul %14, %15, %cst_14 {dimension_numbers = #tpu.dot_dimension_numbers<[1], [0], [0], [1], [0, 0, 1, 1], [], []>} : vector<8x128xf32>, vector<128x8xf32>, vector<8x8xf32> -> vector<8x8xf32>
    %c0_15 = arith.constant 0 : index
    %c0_16 = arith.constant 0 : index
    %17 = vector.load %arg7[%c0_15, %c0_16] : memref<1x8xf32, #tpu.memory_space<vmem>>, vector<1x8xf32>
    %18 = vector.broadcast %17 : vector<1x8xf32> to vector<8x8xf32>
    %19 = arith.addf %16, %18 : vector<8x8xf32>
    %c0_17 = arith.constant 0 : index
    %c0_18 = arith.constant 0 : index
    %20 = vector.load %arg8[%c0_17, %c0_18] : memref<8x8xf32, #tpu.memory_space<vmem>>, vector<8x8xf32>
    tpu.vector_store %arg8[%c0_17, %c0_18], %19 {strides = array<i32>} : memref<8x8xf32, #tpu.memory_space<vmem>>, vector<8x8xf32>,
    return
  }
  func.func @transform_0(%arg0: i32) -> (i32, i32) {
    %c0_i32 = arith.constant 0 : i32
    %c0_i32_0 = arith.constant 0 : i32
    return %arg0, %c0_i32 : i32, i32
  }
  func.func @transform_1(%arg0: i32) -> (i32, i32) {
    %c0_i32 = arith.constant 0 : i32
    %c0_i32_0 = arith.constant 0 : i32
    %c0_i32_1 = arith.constant 0 : i32
    return %c0_i32, %c0_i32_0 : i32, i32
  }
  func.func @transform_2(%arg0: i32) -> (i32, i32) {
    %c0_i32 = arith.constant 0 : i32
    %c0_i32_0 = arith.constant 0 : i32
    %c0_i32_1 = arith.constant 0 : i32
    return %c0_i32, %c0_i32_0 : i32, i32
  }
  func.func @transform_3(%arg0: i32) -> (i32, i32) {
    %c0_i32 = arith.constant 0 : i32
    %c0_i32_0 = arith.constant 0 : i32
    %c0_i32_1 = arith.constant 0 : i32
    return %c0_i32, %c0_i32_0 : i32, i32
  }
  func.func @transform_4(%arg0: i32) -> (i32, i32) {
    %c0_i32 = arith.constant 0 : i32
    %c0_i32_0 = arith.constant 0 : i32
    %c0_i32_1 = arith.constant 0 : i32
    return %c0_i32, %c0_i32_0 : i32, i32
  }
  func.func @transform_5(%arg0: i32) -> (i32, i32) {
    %c0_i32 = arith.constant 0 : i32
    %c0_i32_0 = arith.constant 0 : i32
    %c0_i32_1 = arith.constant 0 : i32
    return %c0_i32, %c0_i32_0 : i32, i32
  }
  func.func @transform_6(%arg0: i32) -> (i32, i32) {
    %c0_i32 = arith.constant 0 : i32
    %c0_i32_0 = arith.constant 0 : i32
    %c0_i32_1 = arith.constant 0 : i32
    return %c0_i32, %c0_i32_0 : i32, i32
  }
  func.func @transform_7(%arg0: i32) -> (i32, i32) {
    %c0_i32 = arith.constant 0 : i32
    %c0_i32_0 = arith.constant 0 : i32
    return %arg0, %c0_i32 : i32, i32
  }
}

</mosaic_0001>

<llo_original>
// kernel: mlp_forward.1
$region0: #{mlp_forward.1}
  #allocation0 [shape = 'u32[]', space=smem, size = 0x4, offset = 0x4, fixed_abs, tag = 'smem constant byte address 0x4 - core index']
  #allocation1 [shape = 'u32[72,128]{1,0:T(1,128)}', space=vmem, size = 0x9000, scoped, tag = 'internal scratch']
  %s0 = inlined_call_operand.vmem [shape: f32[8,16], index: 0, kind: input, shape index: {}]
  %s1 = inlined_call_operand.vmem [shape: f32[16,128], index: 1, kind: input, shape index: {}]
  %s2 = inlined_call_operand.vmem [shape: f32[1,128], index: 2, kind: input, shape index: {}]
  %s3 = inlined_call_operand.vmem [shape: f32[128,128], index: 3, kind: input, shape index: {}]
  %s4 = inlined_call_operand.vmem [shape: f32[1,128], index: 4, kind: input, shape index: {}]
  %s5 = inlined_call_operand.vmem [shape: f32[128,8], index: 5, kind: input, shape index: {}]
  %s6 = inlined_call_operand.vmem [shape: f32[1,8], index: 6, kind: input, shape index: {}]
  %s7 = inlined_call_operand.hbm [shape: f32[8,8], index: 7, kind: output, shape index: {}]
  %s8 = sld [smem:[#allocation0]]
  $region38: #{mlp_forward.1} parent=0
    _
  %s10 = ssub.s32 1, %s8
  %s11 = scalar_select 0, %s10, %s8
  $region1: #{mlp_forward.1} parent=0
    #allocation2 [shape = 'u8[4096]{0}', space=vmem, size = 0x1000, scoped, tag = 'output window, operand 0, single buffered']
    #allocation3 [shape = 's32[1]{0}', space=sflag, size = 0x4, scoped, tag = 'scoped memory for mlp_forward.1']
    %12 = vsyncpa [#allocation3], 0
    // Predicated region
    $region2: #{mlp_forward.1} parent=1 // pred_check
      _
    $region3: #{mlp_forward.1} parent=1 // pred_check_branch
      %14 = sbr.rel (0) target = $region5
    $region4: #{mlp_forward.1} parent=1 // pred_region
      _
    $region5: #{mlp_forward.1} parent=1 // pred_fallthru
      _
    // Predicated region
    $region6: #{mlp_forward.1} parent=1 // pred_check
      _
    $region7: #{mlp_forward.1} parent=1 // pred_check_branch
      %16 = sbr.rel (0) target = $region9
    $region8: #{mlp_forward.1} parent=1 // pred_region
      _
    $region9: #{mlp_forward.1} parent=1 // pred_fallthru
      _
    // Predicated region
    $region10: #{mlp_forward.1} parent=1 // pred_check
      _
    $region11: #{mlp_forward.1} parent=1 // pred_check_branch
      %18 = sbr.rel (0) target = $region13
    $region12: #{mlp_forward.1} parent=1 // pred_region
      _
    $region13: #{mlp_forward.1} parent=1 // pred_fallthru
      _
    // Predicated region
    $region14: #{mlp_forward.1} parent=1 // pred_check
      _
    $region15: #{mlp_forward.1} parent=1 // pred_check_branch
      %20 = sbr.rel (0) target = $region17
    $region16: #{mlp_forward.1} parent=1 // pred_region
      _
    $region17: #{mlp_forward.1} parent=1 // pred_fallthru
      _
    // Predicated region
    $region18: #{mlp_forward.1} parent=1 // pred_check
      _
    $region19: #{mlp_forward.1} parent=1 // pred_check_branch
      %22 = sbr.rel (0) target = $region21
    $region20: #{mlp_forward.1} parent=1 // pred_region
      _
    $region21: #{mlp_forward.1} parent=1 // pred_fallthru
      _
    // Predicated region
    $region22: #{mlp_forward.1} parent=1 // pred_check
      _
    $region23: #{mlp_forward.1} parent=1 // pred_check_branch
      %24 = sbr.rel (0) target = $region25
    $region24: #{mlp_forward.1} parent=1 // pred_region
      _
    $region25: #{mlp_forward.1} parent=1 // pred_fallthru
      _
    // Predicated region
    $region26: #{mlp_forward.1} parent=1 // pred_check
      _
    $region27: #{mlp_forward.1} parent=1 // pred_check_branch
      %26 = sbr.rel (0) target = $region29
    $region28: #{mlp_forward.1} parent=1 // pred_region
      _
    $region29: #{mlp_forward.1} parent=1 // pred_fallthru
      _
    %v27 = vld [vmem:[%s0] sm:$0xff]
    %v28 = vld [vmem:[%s1] sm:$0xff]
    %v29 = vld [vmem:[%s1 + $0x8] sm:$0xff]
    %v30 = vld [vmem:[%s2] sm:$0x1]
    %v32 = vperm.slane %v30, 0
    %vm34 = vcmask 130048
    %v36 = vsel %vm34, %v27, 0
    %38 = vmatpush.msra.mxu0 0.0
    %39 = vmatpush.msra.mxu0 0.0
    %40 = vmatpush.msra.mxu0 0.0
    %41 = vmatpush.msra.mxu0 0.0
    %42 = vmatpush.msra.mxu0 0.0
    %43 = vmatpush.msra.mxu0 0.0
    %44 = vmatpush.msra.mxu0 0.0
    %45 = vmatpush.msra.mxu0 0.0
    %46 = vmatpush.msra.mxu0 0.0
    %47 = vmatpush.msra.mxu0 0.0
    %48 = vmatpush.msra.mxu0 0.0
    %49 = vmatpush.msra.mxu0 0.0
    %50 = vmatpush.msra.mxu0 0.0
    %51 = vmatpush.msra.mxu0 0.0
    %52 = vmatpush.msra.mxu0 %v29
    %53 = vmatpush.msra.mxu0 %v28
    %54 = vmatmul.f32.gmra.mxu0 %v36
    %v55 = vpop.f32.mrf.mxu0
    %v56 = vadd.f32 %v32, %v55
    %57 = vdwg.mxu0
    %v58 = vmax.f32 %v56, 0.0
    %v59 = vld [vmem:[%s3] sm:$0xff]
    %v60 = vld [vmem:[%s3 + $0x8] sm:$0xff]
    %v61 = vld [vmem:[%s3 + $0x10] sm:$0xff]
    %v62 = vld [vmem:[%s3 + $0x18] sm:$0xff]
    %v63 = vld [vmem:[%s3 + $0x20] sm:$0xff]
    %v64 = vld [vmem:[%s3 + $0x28] sm:$0xff]
    %v65 = vld [vmem:[%s3 + $0x30] sm:$0xff]
    %v66 = vld [vmem:[%s3 + $0x38] sm:$0xff]
    %v67 = vld [vmem:[%s3 + $0x40] sm:$0xff]
    %v68 = vld [vmem:[%s3 + $0x48] sm:$0xff]
    %v69 = vld [vmem:[%s3 + $0x50] sm:$0xff]
    %v70 = vld [vmem:[%s3 + $0x58] sm:$0xff]
    %v71 = vld [vmem:[%s3 + $0x60] sm:$0xff]
    %v72 = vld [vmem:[%s3 + $0x68] sm:$0xff]
    %v73 = vld [vmem:[%s3 + $0x70] sm:$0xff]
    %v74 = vld [vmem:[%s3 + $0x78] sm:$0xff]
    %v75 = vld [vmem:[%s4] sm:$0x1]
    %v77 = vperm.slane %v75, 0
    %79 = vmatpush.msra.mxu0 %v74
    %80 = vmatpush.msra.mxu0 %v73
    %81 = vmatpush.msra.mxu0 %v72
    %82 = vmatpush.msra.mxu0 %v71
    %83 = vmatpush.msra.mxu0 %v70
    %84 = vmatpush.msra.mxu0 %v69
    %85 = vmatpush.msra.mxu0 %v68
    %86 = vmatpush.msra.mxu0 %v67
    %87 = vmatpush.msra.mxu0 %v66
    %88 = vmatpush.msra.mxu0 %v65
    %89 = vmatpush.msra.mxu0 %v64
    %90 = vmatpush.msra.mxu0 %v63
    %91 = vmatpush.msra.mxu0 %v62
    %92 = vmatpush.msra.mxu0 %v61
    %93 = vmatpush.msra.mxu0 %v60
    %94 = vmatpush.msra.mxu0 %v59
    %95 = vmatmul.f32.gmra.mxu0 %v58
    %v96 = vpop.f32.mrf.mxu0
    %v97 = vadd.f32 %v77, %v96
    %98 = vdwg.mxu0
    %v99 = vmax.f32 %v97, 0.0
    %v100 = vld [vmem:[%s5] sm:$0xff]
    %v101 = vld [vmem:[%s5 + $0x8] sm:$0xff]
    %v102 = vld [vmem:[%s5 + $0x10] sm:$0xff]
    %v103 = vld [vmem:[%s5 + $0x18] sm:$0xff]
    %v104 = vld [vmem:[%s5 + $0x20] sm:$0xff]
    %v105 = vld [vmem:[%s5 + $0x28] sm:$0xff]
    %v106 = vld [vmem:[%s5 + $0x30] sm:$0xff]
    %v107 = vld [vmem:[%s5 + $0x38] sm:$0xff]
    %v108 = vld [vmem:[%s5 + $0x40] sm:$0xff]
    %v109 = vld [vmem:[%s5 + $0x48] sm:$0xff]
    %v110 = vld [vmem:[%s5 + $0x50] sm:$0xff]
    %v111 = vld [vmem:[%s5 + $0x58] sm:$0xff]
    %v112 = vld [vmem:[%s5 + $0x60] sm:$0xff]
    %v113 = vld [vmem:[%s5 + $0x68] sm:$0xff]
    %v114 = vld [vmem:[%s5 + $0x70] sm:$0xff]
    %v115 = vld [vmem:[%s5 + $0x78] sm:$0xff]
    %v116 = vld [vmem:[%s6] sm:$0x1]
    %v118 = vperm.slane %v116, 0
    %120 = vmatpush.msra.mxu0 %v115
    %121 = vmatpush.msra.mxu0 %v114
    %122 = vmatpush.msra.mxu0 %v113
    %123 = vmatpush.msra.mxu0 %v112
    %124 = vmatpush.msra.mxu0 %v111
    %125 = vmatpush.msra.mxu0 %v110
    %126 = vmatpush.msra.mxu0 %v109
    %127 = vmatpush.msra.mxu0 %v108
    %128 = vmatpush.msra.mxu0 %v107
    %129 = vmatpush.msra.mxu0 %v106
    %130 = vmatpush.msra.mxu0 %v105
    %131 = vmatpush.msra.mxu0 %v104
    %132 = vmatpush.msra.mxu0 %v103
    %133 = vmatpush.msra.mxu0 %v102
    %134 = vmatpush.msra.mxu0 %v101
    %135 = vmatpush.msra.mxu0 %v100
    %136 = vmatmul.f32.gmra.mxu0 %v99
    %v137 = vpop.f32.mrf.mxu0
    %v138 = vadd.f32 %v118, %v137
    %139 = vdwg.mxu0
    %vm140 = vcmask 64512
    %141 = vst.msk [vmem:[#allocation2] sm:$0xff] %vm140, %v138
    // Predicated region
    $region30: #{mlp_forward.1} parent=1 // pred_check
      _
    $region31: #{mlp_forward.1} parent=1 // pred_check_branch
      %143 = sbr.rel (0) target = $region33
    $region32: #{mlp_forward.1} parent=1 // pred_region
      %145 = vsyncadd [#allocation3], 0
      %s147 = sshll.u32 [#allocation2], 4
      %s148 = int_to_ptr.vmem [resolvable:$true] %s147
      %s149 = sshll.u32 %s7, 4
      %s150 = int_to_ptr.hbm [resolvable:$true] %s149
      %152 = dma.vmem_to_hbm [thread:$0]  %s148, 128, %s150, [#allocation3]
    $region33: #{mlp_forward.1} parent=1 // pred_fallthru
      _
    // Predicated region
    $region34: #{mlp_forward.1} parent=1 // pred_check
      _
    $region35: #{mlp_forward.1} parent=1 // pred_check_branch
      %154 = sbr.rel (0) target = $region37
    $region36: #{mlp_forward.1} parent=1 // pred_region
      %156 = dma.done [#allocation3], 128
    $region37: #{mlp_forward.1} parent=1 // pred_fallthru
      _
    %157 = vsyncpa [#allocation3], 1

</llo_original>
